<compile_context>
chip_gen: v7x
topology: tpu7x:2x2x1
jax: 0.10.0
libtpu: 0.0.40
codegen_flags: <defaults>
</compile_context>

<pallas_src>
import functools

import jax
import jax.numpy as jnp
import numpy as np
from jax.experimental import pallas as pl
from jax.experimental.pallas import tpu as pltpu

NUM_VIEWS = 8  # forward() indexes views 0..7 of heads/relations/tails

# Folded weights:  -(1/9) * 1.5 * 0.5 = -1/12   and   -(1/9) * 3.0 * 0.5 = -1/6
_W_AE_CG = -1.0 / 12.0
_W_BF_DI = -1.0 / 6.0


# -----------------------------------------------------------------------------
# Pallas kernel: full MDE forward for one batch tile.
#   h_ref / r_ref / t_ref : (NUM_VIEWS, TB, D) in VMEM (f32 or bf16)
#   out_ref               : (TB, 1)            in VMEM (f32)
# Per-pair fusion: build one slab, reduce it, accumulate, move on — keeps the
# live set to 1-2 (TB, D) slabs instead of 8.
# -----------------------------------------------------------------------------
def mde_kernel(h_ref, r_ref, t_ref, out_ref):
    f32 = jnp.float32

    def view(ref, v):
        # Upcast at the load so bf16 inputs are accumulated in f32.
        return ref[v].astype(f32)

    def l2(x):
        # torch.norm(x, p=2, dim=1) -> (TB, 1) column (lane reduction + sqrt).
        return jnp.sqrt(jnp.sum(x * x, axis=-1, keepdims=True))

    # a / e : h + r - t
    acc = l2(view(h_ref, 0) + view(r_ref, 0) - view(t_ref, 0)) * _W_AE_CG
    acc = acc + l2(view(h_ref, 4) + view(r_ref, 4) - view(t_ref, 4)) * _W_AE_CG
    # c / g : t + r - h
    acc = acc + l2(view(t_ref, 2) + view(r_ref, 2) - view(h_ref, 2)) * _W_AE_CG
    acc = acc + l2(view(t_ref, 6) + view(r_ref, 6) - view(h_ref, 6)) * _W_AE_CG
    # b / f : h + t - r
    acc = acc + l2(view(h_ref, 1) + view(t_ref, 1) - view(r_ref, 1)) * _W_BF_DI
    acc = acc + l2(view(h_ref, 5) + view(t_ref, 5) - view(r_ref, 5)) * _W_BF_DI
    # d / i : h - r * t
    acc = acc + l2(view(h_ref, 3) - view(r_ref, 3) * view(t_ref, 3)) * _W_BF_DI
    acc = acc + l2(view(h_ref, 7) - view(r_ref, 7) * view(t_ref, 7)) * _W_BF_DI

    out_ref[...] = acc


# -----------------------------------------------------------------------------
# Batch-tile selection.  Prefer TB=512 (pushes per-step DMA well past the
# ~0.35us pipeline overhead), but keep >=2 grid steps when B > 128 so the
# "parallel" grid axis can be split across v7x's two TensorCores.
# -----------------------------------------------------------------------------
def _pick_batch_tile(b_pad):
    if b_pad <= 128:
        return b_pad
    cap = min(512, b_pad // 2)  # at least 2 grid steps
    for tb in (512, 256, 128):
        if tb <= cap and b_pad % tb == 0:
            return tb
    return 128  # b_pad is padded to a multiple of 128 below, so always valid


# -----------------------------------------------------------------------------
# Pallas wrapper: padding, tiling, pallas_call.
# -----------------------------------------------------------------------------
def mde_forward_pallas(heads, relations, tails, *, cast_to_bf16=False):
    V, B, D = heads.shape
    assert V == NUM_VIEWS, "MDE.forward requires 8 views per input"
    assert relations.shape == (V, B, D) and tails.shape == (V, B, D)

    in_dtype = jnp.bfloat16 if cast_to_bf16 else jnp.float32
    heads = heads.astype(in_dtype)
    relations = relations.astype(in_dtype)
    tails = tails.astype(in_dtype)

    # Pad the batch so it tiles cleanly (ragged batches allowed; padding rows
    # are zeros and are sliced off the output).
    align = 128 if B > 128 else 8
    b_pad = ((B + align - 1) // align) * align
    if b_pad != B:
        pad = ((0, 0), (0, b_pad - B), (0, 0))
        heads = jnp.pad(heads, pad)
        relations = jnp.pad(relations, pad)
        tails = jnp.pad(tails, pad)

    TB = _pick_batch_tile(b_pad)
    grid = (b_pad // TB,)

    in_spec = pl.BlockSpec((NUM_VIEWS, TB, D), lambda i: (0, i, 0))
    itemsize = jnp.dtype(in_dtype).itemsize
    cost = pl.CostEstimate(
        flops=8 * 3 * b_pad * D,
        transcendentals=8 * b_pad,
        bytes_accessed=3 * NUM_VIEWS * b_pad * D * itemsize + b_pad * 4,
    )

    out = pl.pallas_call(
        mde_kernel,
        out_shape=jax.ShapeDtypeStruct((b_pad, 1), jnp.float32),
        grid=grid,
        in_specs=[in_spec, in_spec, in_spec],
        out_specs=pl.BlockSpec((TB, 1), lambda i: (i, 0)),
        compiler_params=pltpu.CompilerParams(
            dimension_semantics=("parallel",),
            vmem_limit_bytes=48 << 20,  # TB=512 f32 needs ~14 MiB double-buffered
        ),
        cost_estimate=cost,
    )(heads, relations, tails)
    return out[:B, 0]


# -----------------------------------------------------------------------------
# Dispatcher: at tiny batches the pallas_call launch/prologue dominates the
# ~hundreds of KiB of HBM traffic, so fall back to the fused XLA path there.
# -----------------------------------------------------------------------------
def mde_forward(heads, relations, tails, *, cast_to_bf16=False):
    B = heads.shape[1]
    if B <= 128:
        return mde_reference(heads, relations, tails)
    return mde_forward_pallas(heads, relations, tails, cast_to_bf16=cast_to_bf16)


# -----------------------------------------------------------------------------
# Plain-JAX reference (mirrors the PyTorch forward) for validation.
# -----------------------------------------------------------------------------
def mde_reference(heads, relations, tails):
    h, r, t = heads, relations, tails

    def norm(x):
        return jnp.sqrt(jnp.sum(x * x, axis=1))

    a = h[0] + r[0] - t[0]
    b = h[1] + t[1] - r[1]
    c = t[2] + r[2] - h[2]
    d = h[3] - r[3] * t[3]
    e = h[4] + r[4] - t[4]
    f = h[5] + t[5] - r[5]
    g = t[6] + r[6] - h[6]
    i2 = h[7] - r[7] * t[7]

    score_a = (norm(a) + norm(e)) / 2.0
    score_b = (norm(b) + norm(f)) / 2.0
    score_c = (norm(c) + norm(g)) / 2.0
    score_d = (norm(d) + norm(i2)) / 2.0
    score = (1.5 * score_a + 3.0 * score_b + 1.5 * score_c + 3.0 * score_d) / 9.0
    return -score


if __name__ == "__main__":
    key = jax.random.PRNGKey(0)
    D = 128

    # --- small batch: single-step grid (TB=B) through the Pallas path --------
    B = 16
    k1, k2, k3 = jax.random.split(key, 3)
    heads = jax.random.normal(k1, (NUM_VIEWS, B, D), jnp.float32)
    relations = jax.random.normal(k2, (NUM_VIEWS, B, D), jnp.float32)
    tails = jax.random.normal(k3, (NUM_VIEWS, B, D), jnp.float32)

    out = jax.block_until_ready(mde_forward_pallas(heads, relations, tails))
    ref = jax.block_until_ready(mde_reference(heads, relations, tails))
    np.testing.assert_allclose(np.asarray(out), np.asarray(ref), rtol=1e-5, atol=1e-5)

    # --- larger batch: exercises the multi-step tiled path (grid > 1) --------
    B2 = 256
    k4, k5, k6 = jax.random.split(jax.random.PRNGKey(1), 3)
    heads2 = jax.random.normal(k4, (NUM_VIEWS, B2, D), jnp.float32)
    relations2 = jax.random.normal(k5, (NUM_VIEWS, B2, D), jnp.float32)
    tails2 = jax.random.normal(k6, (NUM_VIEWS, B2, D), jnp.float32)

    out2 = jax.block_until_ready(mde_forward(heads2, relations2, tails2))
    ref2 = jax.block_until_ready(mde_reference(heads2, relations2, tails2))
    np.testing.assert_allclose(np.asarray(out2), np.asarray(ref2), rtol=1e-5, atol=1e-5)

    # --- bf16-input path (halves HBM traffic; f32 accumulation in-kernel) ----
    out3 = jax.block_until_ready(
        mde_forward_pallas(heads2, relations2, tails2, cast_to_bf16=True))
    np.testing.assert_allclose(np.asarray(out3), np.asarray(ref2), rtol=5e-2, atol=5e-2)

    print("KERNEL_OK")
</pallas_src>

<mosaic_0001>
module attributes {stable_mosaic.version = 11 : i64} {
  func.func @mde_kernel(%arg0: i32, %arg1: memref<8x16x128xf32, #tpu.memory_space<vmem>>, %arg2: memref<8x16x128xf32, #tpu.memory_space<vmem>>, %arg3: memref<8x16x128xf32, #tpu.memory_space<vmem>>, %arg4: memref<16x1xf32, #tpu.memory_space<vmem>>) attributes {dimension_semantics = [#tpu.dimension_semantics<parallel>], iteration_bounds = array<i64: 1>, scalar_prefetch = 0 : i64, scratch_operands = 0 : i64, tpu.core_type = #tpu.core_type<tc>, window_params = [{transform_indices = @transform_0, window_bounds = array<i64: 8, 16, 128>}, {transform_indices = @transform_1, window_bounds = array<i64: 8, 16, 128>}, {transform_indices = @transform_2, window_bounds = array<i64: 8, 16, 128>}, {transform_indices = @transform_3, window_bounds = array<i64: 16, 1>}]} {
    %c0 = arith.constant 0 : index
    %c0_0 = arith.constant 0 : index
    %c0_1 = arith.constant 0 : index
    %0 = vector.load %arg1[%c0, %c0_0, %c0_1] : memref<8x16x128xf32, #tpu.memory_space<vmem>>, vector<1x16x128xf32>
    %1 = vector.shape_cast %0 : vector<1x16x128xf32> to vector<16x128xf32>
    %c0_2 = arith.constant 0 : index
    %c0_3 = arith.constant 0 : index
    %c0_4 = arith.constant 0 : index
    %2 = vector.load %arg2[%c0_2, %c0_3, %c0_4] : memref<8x16x128xf32, #tpu.memory_space<vmem>>, vector<1x16x128xf32>
    %3 = vector.shape_cast %2 : vector<1x16x128xf32> to vector<16x128xf32>
    %4 = arith.addf %1, %3 : vector<16x128xf32>
    %c0_5 = arith.constant 0 : index
    %c0_6 = arith.constant 0 : index
    %c0_7 = arith.constant 0 : index
    %5 = vector.load %arg3[%c0_5, %c0_6, %c0_7] : memref<8x16x128xf32, #tpu.memory_space<vmem>>, vector<1x16x128xf32>
    %6 = vector.shape_cast %5 : vector<1x16x128xf32> to vector<16x128xf32>
    %7 = arith.subf %4, %6 : vector<16x128xf32>
    %8 = arith.mulf %7, %7 : vector<16x128xf32>
    %cst = arith.constant dense<0.000000e+00> : vector<16xf32>
    %9 = vector.multi_reduction <add>, %8, %cst [1] : vector<16x128xf32> to vector<16xf32>
    %10 = vector.shape_cast %9 : vector<16xf32> to vector<16x1xf32>
    %11 = math.sqrt %10 : vector<16x1xf32>
    %cst_8 = arith.constant -0.0833333358 : f32
    %12 = vector.broadcast %cst_8 : f32 to vector<16x1xf32>
    %13 = arith.mulf %11, %12 : vector<16x1xf32>
    %c4 = arith.constant 4 : index
    %c0_9 = arith.constant 0 : index
    %c0_10 = arith.constant 0 : index
    %14 = vector.load %arg1[%c4, %c0_9, %c0_10] : memref<8x16x128xf32, #tpu.memory_space<vmem>>, vector<1x16x128xf32>
    %15 = vector.shape_cast %14 : vector<1x16x128xf32> to vector<16x128xf32>
    %c4_11 = arith.constant 4 : index
    %c0_12 = arith.constant 0 : index
    %c0_13 = arith.constant 0 : index
    %16 = vector.load %arg2[%c4_11, %c0_12, %c0_13] : memref<8x16x128xf32, #tpu.memory_space<vmem>>, vector<1x16x128xf32>
    %17 = vector.shape_cast %16 : vector<1x16x128xf32> to vector<16x128xf32>
    %18 = arith.addf %15, %17 : vector<16x128xf32>
    %c4_14 = arith.constant 4 : index
    %c0_15 = arith.constant 0 : index
    %c0_16 = arith.constant 0 : index
    %19 = vector.load %arg3[%c4_14, %c0_15, %c0_16] : memref<8x16x128xf32, #tpu.memory_space<vmem>>, vector<1x16x128xf32>
    %20 = vector.shape_cast %19 : vector<1x16x128xf32> to vector<16x128xf32>
    %21 = arith.subf %18, %20 : vector<16x128xf32>
    %22 = arith.mulf %21, %21 : vector<16x128xf32>
    %cst_17 = arith.constant dense<0.000000e+00> : vector<16xf32>
    %23 = vector.multi_reduction <add>, %22, %cst_17 [1] : vector<16x128xf32> to vector<16xf32>
    %24 = vector.shape_cast %23 : vector<16xf32> to vector<16x1xf32>
    %25 = math.sqrt %24 : vector<16x1xf32>
    %cst_18 = arith.constant -0.0833333358 : f32
    %26 = vector.broadcast %cst_18 : f32 to vector<16x1xf32>
    %27 = arith.mulf %25, %26 : vector<16x1xf32>
    %28 = arith.addf %13, %27 : vector<16x1xf32>
    %c2 = arith.constant 2 : index
    %c0_19 = arith.constant 0 : index
    %c0_20 = arith.constant 0 : index
    %29 = vector.load %arg3[%c2, %c0_19, %c0_20] : memref<8x16x128xf32, #tpu.memory_space<vmem>>, vector<1x16x128xf32>
    %30 = vector.shape_cast %29 : vector<1x16x128xf32> to vector<16x128xf32>
    %c2_21 = arith.constant 2 : index
    %c0_22 = arith.constant 0 : index
    %c0_23 = arith.constant 0 : index
    %31 = vector.load %arg2[%c2_21, %c0_22, %c0_23] : memref<8x16x128xf32, #tpu.memory_space<vmem>>, vector<1x16x128xf32>
    %32 = vector.shape_cast %31 : vector<1x16x128xf32> to vector<16x128xf32>
    %33 = arith.addf %30, %32 : vector<16x128xf32>
    %c2_24 = arith.constant 2 : index
    %c0_25 = arith.constant 0 : index
    %c0_26 = arith.constant 0 : index
    %34 = vector.load %arg1[%c2_24, %c0_25, %c0_26] : memref<8x16x128xf32, #tpu.memory_space<vmem>>, vector<1x16x128xf32>
    %35 = vector.shape_cast %34 : vector<1x16x128xf32> to vector<16x128xf32>
    %36 = arith.subf %33, %35 : vector<16x128xf32>
    %37 = arith.mulf %36, %36 : vector<16x128xf32>
    %cst_27 = arith.constant dense<0.000000e+00> : vector<16xf32>
    %38 = vector.multi_reduction <add>, %37, %cst_27 [1] : vector<16x128xf32> to vector<16xf32>
    %39 = vector.shape_cast %38 : vector<16xf32> to vector<16x1xf32>
    %40 = math.sqrt %39 : vector<16x1xf32>
    %cst_28 = arith.constant -0.0833333358 : f32
    %41 = vector.broadcast %cst_28 : f32 to vector<16x1xf32>
    %42 = arith.mulf %40, %41 : vector<16x1xf32>
    %43 = arith.addf %28, %42 : vector<16x1xf32>
    %c6 = arith.constant 6 : index
    %c0_29 = arith.constant 0 : index
    %c0_30 = arith.constant 0 : index
    %44 = vector.load %arg3[%c6, %c0_29, %c0_30] : memref<8x16x128xf32, #tpu.memory_space<vmem>>, vector<1x16x128xf32>
    %45 = vector.shape_cast %44 : vector<1x16x128xf32> to vector<16x128xf32>
    %c6_31 = arith.constant 6 : index
    %c0_32 = arith.constant 0 : index
    %c0_33 = arith.constant 0 : index
    %46 = vector.load %arg2[%c6_31, %c0_32, %c0_33] : memref<8x16x128xf32, #tpu.memory_space<vmem>>, vector<1x16x128xf32>
    %47 = vector.shape_cast %46 : vector<1x16x128xf32> to vector<16x128xf32>
    %48 = arith.addf %45, %47 : vector<16x128xf32>
    %c6_34 = arith.constant 6 : index
    %c0_35 = arith.constant 0 : index
    %c0_36 = arith.constant 0 : index
    %49 = vector.load %arg1[%c6_34, %c0_35, %c0_36] : memref<8x16x128xf32, #tpu.memory_space<vmem>>, vector<1x16x128xf32>
    %50 = vector.shape_cast %49 : vector<1x16x128xf32> to vector<16x128xf32>
    %51 = arith.subf %48, %50 : vector<16x128xf32>
    %52 = arith.mulf %51, %51 : vector<16x128xf32>
    %cst_37 = arith.constant dense<0.000000e+00> : vector<16xf32>
    %53 = vector.multi_reduction <add>, %52, %cst_37 [1] : vector<16x128xf32> to vector<16xf32>
    %54 = vector.shape_cast %53 : vector<16xf32> to vector<16x1xf32>
    %55 = math.sqrt %54 : vector<16x1xf32>
    %cst_38 = arith.constant -0.0833333358 : f32
    %56 = vector.broadcast %cst_38 : f32 to vector<16x1xf32>
    %57 = arith.mulf %55, %56 : vector<16x1xf32>
    %58 = arith.addf %43, %57 : vector<16x1xf32>
    %c1 = arith.constant 1 : index
    %c0_39 = arith.constant 0 : index
    %c0_40 = arith.constant 0 : index
    %59 = vector.load %arg1[%c1, %c0_39, %c0_40] : memref<8x16x128xf32, #tpu.memory_space<vmem>>, vector<1x16x128xf32>
    %60 = vector.shape_cast %59 : vector<1x16x128xf32> to vector<16x128xf32>
    %c1_41 = arith.constant 1 : index
    %c0_42 = arith.constant 0 : index
    %c0_43 = arith.constant 0 : index
    %61 = vector.load %arg3[%c1_41, %c0_42, %c0_43] : memref<8x16x128xf32, #tpu.memory_space<vmem>>, vector<1x16x128xf32>
    %62 = vector.shape_cast %61 : vector<1x16x128xf32> to vector<16x128xf32>
    %63 = arith.addf %60, %62 : vector<16x128xf32>
    %c1_44 = arith.constant 1 : index
    %c0_45 = arith.constant 0 : index
    %c0_46 = arith.constant 0 : index
    %64 = vector.load %arg2[%c1_44, %c0_45, %c0_46] : memref<8x16x128xf32, #tpu.memory_space<vmem>>, vector<1x16x128xf32>
    %65 = vector.shape_cast %64 : vector<1x16x128xf32> to vector<16x128xf32>
    %66 = arith.subf %63, %65 : vector<16x128xf32>
    %67 = arith.mulf %66, %66 : vector<16x128xf32>
    %cst_47 = arith.constant dense<0.000000e+00> : vector<16xf32>
    %68 = vector.multi_reduction <add>, %67, %cst_47 [1] : vector<16x128xf32> to vector<16xf32>
    %69 = vector.shape_cast %68 : vector<16xf32> to vector<16x1xf32>
    %70 = math.sqrt %69 : vector<16x1xf32>
    %cst_48 = arith.constant -0.166666672 : f32
    %71 = vector.broadcast %cst_48 : f32 to vector<16x1xf32>
    %72 = arith.mulf %70, %71 : vector<16x1xf32>
    %73 = arith.addf %58, %72 : vector<16x1xf32>
    %c5 = arith.constant 5 : index
    %c0_49 = arith.constant 0 : index
    %c0_50 = arith.constant 0 : index
    %74 = vector.load %arg1[%c5, %c0_49, %c0_50] : memref<8x16x128xf32, #tpu.memory_space<vmem>>, vector<1x16x128xf32>
    %75 = vector.shape_cast %74 : vector<1x16x128xf32> to vector<16x128xf32>
    %c5_51 = arith.constant 5 : index
    %c0_52 = arith.constant 0 : index
    %c0_53 = arith.constant 0 : index
    %76 = vector.load %arg3[%c5_51, %c0_52, %c0_53] : memref<8x16x128xf32, #tpu.memory_space<vmem>>, vector<1x16x128xf32>
    %77 = vector.shape_cast %76 : vector<1x16x128xf32> to vector<16x128xf32>
    %78 = arith.addf %75, %77 : vector<16x128xf32>
    %c5_54 = arith.constant 5 : index
    %c0_55 = arith.constant 0 : index
    %c0_56 = arith.constant 0 : index
    %79 = vector.load %arg2[%c5_54, %c0_55, %c0_56] : memref<8x16x128xf32, #tpu.memory_space<vmem>>, vector<1x16x128xf32>
    %80 = vector.shape_cast %79 : vector<1x16x128xf32> to vector<16x128xf32>
    %81 = arith.subf %78, %80 : vector<16x128xf32>
    %82 = arith.mulf %81, %81 : vector<16x128xf32>
    %cst_57 = arith.constant dense<0.000000e+00> : vector<16xf32>
    %83 = vector.multi_reduction <add>, %82, %cst_57 [1] : vector<16x128xf32> to vector<16xf32>
    %84 = vector.shape_cast %83 : vector<16xf32> to vector<16x1xf32>
    %85 = math.sqrt %84 : vector<16x1xf32>
    %cst_58 = arith.constant -0.166666672 : f32
    %86 = vector.broadcast %cst_58 : f32 to vector<16x1xf32>
    %87 = arith.mulf %85, %86 : vector<16x1xf32>
    %88 = arith.addf %73, %87 : vector<16x1xf32>
    %c3 = arith.constant 3 : index
    %c0_59 = arith.constant 0 : index
    %c0_60 = arith.constant 0 : index
    %89 = vector.load %arg1[%c3, %c0_59, %c0_60] : memref<8x16x128xf32, #tpu.memory_space<vmem>>, vector<1x16x128xf32>
    %90 = vector.shape_cast %89 : vector<1x16x128xf32> to vector<16x128xf32>
    %c3_61 = arith.constant 3 : index
    %c0_62 = arith.constant 0 : index
    %c0_63 = arith.constant 0 : index
    %91 = vector.load %arg2[%c3_61, %c0_62, %c0_63] : memref<8x16x128xf32, #tpu.memory_space<vmem>>, vector<1x16x128xf32>
    %92 = vector.shape_cast %91 : vector<1x16x128xf32> to vector<16x128xf32>
    %c3_64 = arith.constant 3 : index
    %c0_65 = arith.constant 0 : index
    %c0_66 = arith.constant 0 : index
    %93 = vector.load %arg3[%c3_64, %c0_65, %c0_66] : memref<8x16x128xf32, #tpu.memory_space<vmem>>, vector<1x16x128xf32>
    %94 = vector.shape_cast %93 : vector<1x16x128xf32> to vector<16x128xf32>
    %95 = arith.mulf %92, %94 : vector<16x128xf32>
    %96 = arith.subf %90, %95 : vector<16x128xf32>
    %97 = arith.mulf %96, %96 : vector<16x128xf32>
    %cst_67 = arith.constant dense<0.000000e+00> : vector<16xf32>
    %98 = vector.multi_reduction <add>, %97, %cst_67 [1] : vector<16x128xf32> to vector<16xf32>
    %99 = vector.shape_cast %98 : vector<16xf32> to vector<16x1xf32>
    %100 = math.sqrt %99 : vector<16x1xf32>
    %cst_68 = arith.constant -0.166666672 : f32
    %101 = vector.broadcast %cst_68 : f32 to vector<16x1xf32>
    %102 = arith.mulf %100, %101 : vector<16x1xf32>
    %103 = arith.addf %88, %102 : vector<16x1xf32>
    %c7 = arith.constant 7 : index
    %c0_69 = arith.constant 0 : index
    %c0_70 = arith.constant 0 : index
    %104 = vector.load %arg1[%c7, %c0_69, %c0_70] : memref<8x16x128xf32, #tpu.memory_space<vmem>>, vector<1x16x128xf32>
    %105 = vector.shape_cast %104 : vector<1x16x128xf32> to vector<16x128xf32>
    %c7_71 = arith.constant 7 : index
    %c0_72 = arith.constant 0 : index
    %c0_73 = arith.constant 0 : index
    %106 = vector.load %arg2[%c7_71, %c0_72, %c0_73] : memref<8x16x128xf32, #tpu.memory_space<vmem>>, vector<1x16x128xf32>
    %107 = vector.shape_cast %106 : vector<1x16x128xf32> to vector<16x128xf32>
    %c7_74 = arith.constant 7 : index
    %c0_75 = arith.constant 0 : index
    %c0_76 = arith.constant 0 : index
    %108 = vector.load %arg3[%c7_74, %c0_75, %c0_76] : memref<8x16x128xf32, #tpu.memory_space<vmem>>, vector<1x16x128xf32>
    %109 = vector.shape_cast %108 : vector<1x16x128xf32> to vector<16x128xf32>
    %110 = arith.mulf %107, %109 : vector<16x128xf32>
    %111 = arith.subf %105, %110 : vector<16x128xf32>
    %112 = arith.mulf %111, %111 : vector<16x128xf32>
    %cst_77 = arith.constant dense<0.000000e+00> : vector<16xf32>
    %113 = vector.multi_reduction <add>, %112, %cst_77 [1] : vector<16x128xf32> to vector<16xf32>
    %114 = vector.shape_cast %113 : vector<16xf32> to vector<16x1xf32>
    %115 = math.sqrt %114 : vector<16x1xf32>
    %cst_78 = arith.constant -0.166666672 : f32
    %116 = vector.broadcast %cst_78 : f32 to vector<16x1xf32>
    %117 = arith.mulf %115, %116 : vector<16x1xf32>
    %118 = arith.addf %103, %117 : vector<16x1xf32>
    %c0_79 = arith.constant 0 : index
    %c0_80 = arith.constant 0 : index
    %119 = vector.load %arg4[%c0_79, %c0_80] : memref<16x1xf32, #tpu.memory_space<vmem>>, vector<16x1xf32>
    tpu.vector_store %arg4[%c0_79, %c0_80], %118 {strides = array<i32>} : memref<16x1xf32, #tpu.memory_space<vmem>>, vector<16x1xf32>,
    return
  }
  func.func @transform_0(%arg0: i32) -> (i32, i32, i32) {
    %c0_i32 = arith.constant 0 : i32
    %c0_i32_0 = arith.constant 0 : i32
    %c0_i32_1 = arith.constant 0 : i32
    return %c0_i32, %arg0, %c0_i32_0 : i32, i32, i32
  }
  func.func @transform_1(%arg0: i32) -> (i32, i32, i32) {
    %c0_i32 = arith.constant 0 : i32
    %c0_i32_0 = arith.constant 0 : i32
    %c0_i32_1 = arith.constant 0 : i32
    return %c0_i32, %arg0, %c0_i32_0 : i32, i32, i32
  }
  func.func @transform_2(%arg0: i32) -> (i32, i32, i32) {
    %c0_i32 = arith.constant 0 : i32
    %c0_i32_0 = arith.constant 0 : i32
    %c0_i32_1 = arith.constant 0 : i32
    return %c0_i32, %arg0, %c0_i32_0 : i32, i32, i32
  }
  func.func @transform_3(%arg0: i32) -> (i32, i32) {
    %c0_i32 = arith.constant 0 : i32
    %c0_i32_0 = arith.constant 0 : i32
    return %arg0, %c0_i32 : i32, i32
  }
}

</mosaic_0001>

<llo_original>
// kernel: tpu_custom_call.1
$region0: #{tpu_custom_call.1}
  #allocation0 [shape = 'u32[]', space=smem, size = 0x4, offset = 0x4, fixed_abs, tag = 'smem constant byte address 0x4 - core index']
  #allocation1 [shape = 'u32[144,128]{1,0:T(1,128)}', space=vmem, size = 0x12000, scoped, tag = 'internal scratch']
  %s0 = inlined_call_operand.hbm [shape: f32[8,16,128], index: 0, kind: input, shape index: {}]
  %s1 = inlined_call_operand.hbm [shape: f32[8,16,128], index: 1, kind: input, shape index: {}]
  %s2 = inlined_call_operand.hbm [shape: f32[8,16,128], index: 2, kind: input, shape index: {}]
  %s3 = inlined_call_operand.vmem [shape: f32[16,1], index: 3, kind: output, shape index: {}]
  %s4 = sld [smem:[#allocation0]]
  $region34: #{tpu_custom_call.1} parent=0
    _
  %s6 = ssub.s32 1, %s4
  %s7 = scalar_select 0, %s6, %s4
  $region1: #{tpu_custom_call.1} parent=0
    #allocation2 [shape = 'u8[65536]{0}', space=vmem, size = 0x10000, scoped, tag = 'input window, operand 0, single buffered']
    #allocation3 [shape = 's32[1]{0}', space=sflag, size = 0x4, scoped, tag = 'scoped memory for tpu_custom_call.1']
    #allocation4 [shape = 'u8[65536]{0}', space=vmem, size = 0x10000, scoped, tag = 'input window, operand 1, single buffered']
    #allocation5 [shape = 's32[1]{0}', space=sflag, size = 0x4, scoped, tag = 'scoped memory for tpu_custom_call.1']
    #allocation6 [shape = 'u8[65536]{0}', space=vmem, size = 0x10000, scoped, tag = 'input window, operand 2, single buffered']
    %8 = vsyncpa [#allocation3], 0
    %9 = vsyncpa [#allocation5], 0
    // Predicated region
    $region2: #{tpu_custom_call.1} parent=1 // pred_check
      _
    $region3: #{tpu_custom_call.1} parent=1 // pred_check_branch
      %11 = sbr.rel (0) target = $region5
    $region4: #{tpu_custom_call.1} parent=1 // pred_region
      %s13 = ssub.s32 2048, 2048
      %14 = vsyncadd [#allocation3], %s13
      %s15 = sshll.u32 [#allocation2], 4
      %s16 = int_to_ptr.vmem [resolvable:$true] %s15
      %21 = dma.hbm_to_vmem [thread:$0]  %s0, 2048, %s16, [#allocation3], 128, 128, 8
    $region5: #{tpu_custom_call.1} parent=1 // pred_fallthru
      _
    // Predicated region
    $region6: #{tpu_custom_call.1} parent=1 // pred_check
      _
    $region7: #{tpu_custom_call.1} parent=1 // pred_check_branch
      %23 = sbr.rel (0) target = $region9
    $region8: #{tpu_custom_call.1} parent=1 // pred_region
      %s25 = ssub.s32 2048, 2048
      %26 = vsyncadd [#allocation5], %s25
      %s27 = sshll.u32 [#allocation4], 4
      %s28 = int_to_ptr.vmem [resolvable:$true] %s27
      %33 = dma.hbm_to_vmem [thread:$0]  %s1, 2048, %s28, [#allocation5], 128, 128, 8
    $region9: #{tpu_custom_call.1} parent=1 // pred_fallthru
      _
    // Predicated region
    $region10: #{tpu_custom_call.1} parent=1 // pred_check
      _
    $region11: #{tpu_custom_call.1} parent=1 // pred_check_branch
      %35 = sbr.rel (0) target = $region13
    $region12: #{tpu_custom_call.1} parent=1 // pred_region
      %s37 = ssub.s32 2048, 2048
      %38 = vsyncadd [#allocation5], %s37
      %s39 = sshll.u32 [#allocation6], 4
      %s40 = int_to_ptr.vmem [resolvable:$true] %s39
      %45 = dma.hbm_to_vmem [thread:$0]  %s2, 2048, %s40, [#allocation5], 128, 128, 8
    $region13: #{tpu_custom_call.1} parent=1 // pred_fallthru
      _
    // Predicated region
    $region14: #{tpu_custom_call.1} parent=1 // pred_check
      _
    $region15: #{tpu_custom_call.1} parent=1 // pred_check_branch
      %47 = sbr.rel (0) target = $region17
    $region16: #{tpu_custom_call.1} parent=1 // pred_region
      %48 = dma.done [#allocation3], 2048
    $region17: #{tpu_custom_call.1} parent=1 // pred_fallthru
      _
    // Predicated region
    $region18: #{tpu_custom_call.1} parent=1 // pred_check
      _
    $region19: #{tpu_custom_call.1} parent=1 // pred_check_branch
      %50 = sbr.rel (0) target = $region21
    $region20: #{tpu_custom_call.1} parent=1 // pred_region
      %51 = dma.done [#allocation5], 2048
    $region21: #{tpu_custom_call.1} parent=1 // pred_fallthru
      _
    // Predicated region
    $region22: #{tpu_custom_call.1} parent=1 // pred_check
      _
    $region23: #{tpu_custom_call.1} parent=1 // pred_check_branch
      %53 = sbr.rel (0) target = $region25
    $region24: #{tpu_custom_call.1} parent=1 // pred_region
      %54 = dma.done [#allocation5], 2048
    $region25: #{tpu_custom_call.1} parent=1 // pred_fallthru
      _
    %v55 = vld [vmem:[#allocation2] sm:$0xff]
    %v56 = vld [vmem:[#allocation2 + $0x8] sm:$0xff]
    %v57 = vld [vmem:[#allocation4] sm:$0xff]
    %v58 = vld [vmem:[#allocation4 + $0x8] sm:$0xff]
    %v59 = vadd.f32 %v55, %v57
    %v60 = vadd.f32 %v56, %v58
    %v61 = vld [vmem:[#allocation6] sm:$0xff]
    %v62 = vld [vmem:[#allocation6 + $0x8] sm:$0xff]
    %v63 = vsub.f32 %v59, %v61
    %v64 = vsub.f32 %v60, %v62
    %v65 = vmul.f32 %v63, %v63
    %v66 = vmul.f32 %v64, %v64
    %67 = vadd.xlane.f32.xlu0 %v65
    %v68 = vpop.xlane.xlu0 %67
    %69 = vadd.xlane.f32.xlu0 %v66
    %v70 = vpop.xlane.xlu0 %69
    %v71 = vrsqrt.pop %v68
    %v72 = vmul.f32 %v68, %v71
    %vm73 = vcmp.eq.f32.partialorder %v68, inf
    %v74 = vsel %vm73, %v68, %v72
    %vm75 = vcmp.eq.f32.partialorder %v68, 0.0
    %v76 = vand.u32 %v68, 2147483648
    %v77 = vsel %vm75, %v76, %v74
    %v78 = vrsqrt.pop %v70
    %v79 = vmul.f32 %v70, %v78
    %vm80 = vcmp.eq.f32.partialorder %v70, inf
    %v81 = vsel %vm80, %v70, %v79
    %vm82 = vcmp.eq.f32.partialorder %v70, 0.0
    %v83 = vand.u32 %v70, 2147483648
    %v84 = vsel %vm82, %v83, %v81
    %v85 = vmul.f32 %v77, -0.083333336
    %v86 = vmul.f32 %v84, -0.083333336
    %s87 = scalar_lea.vmem [#allocation2], 64
    %v88 = vld [vmem:[%s87] sm:$0xff]
    %v89 = vld [vmem:[%s87 + $0x8] sm:$0xff]
    %s90 = scalar_lea.vmem [#allocation4], 64
    %v91 = vld [vmem:[%s90] sm:$0xff]
    %v92 = vld [vmem:[%s90 + $0x8] sm:$0xff]
    %v93 = vadd.f32 %v88, %v91
    %v94 = vadd.f32 %v89, %v92
    %s95 = scalar_lea.vmem [#allocation6], 64
    %v96 = vld [vmem:[%s95] sm:$0xff]
    %v97 = vld [vmem:[%s95 + $0x8] sm:$0xff]
    %v98 = vsub.f32 %v93, %v96
    %v99 = vsub.f32 %v94, %v97
    %v100 = vmul.f32 %v98, %v98
    %v101 = vmul.f32 %v99, %v99
    %102 = vadd.xlane.f32.xlu0 %v100
    %v103 = vpop.xlane.xlu0 %102
    %104 = vadd.xlane.f32.xlu0 %v101
    %v105 = vpop.xlane.xlu0 %104
    %v106 = vrsqrt.pop %v103
    %v107 = vmul.f32 %v103, %v106
    %vm108 = vcmp.eq.f32.partialorder %v103, inf
    %v109 = vsel %vm108, %v103, %v107
    %vm110 = vcmp.eq.f32.partialorder %v103, 0.0
    %v111 = vand.u32 %v103, 2147483648
    %v112 = vsel %vm110, %v111, %v109
    %v113 = vrsqrt.pop %v105
    %v114 = vmul.f32 %v105, %v113
    %vm115 = vcmp.eq.f32.partialorder %v105, inf
    %v116 = vsel %vm115, %v105, %v114
    %vm117 = vcmp.eq.f32.partialorder %v105, 0.0
    %v118 = vand.u32 %v105, 2147483648
    %v119 = vsel %vm117, %v118, %v116
    %v120 = vmul.f32 %v112, -0.083333336
    %v121 = vmul.f32 %v119, -0.083333336
    %v122 = vadd.f32 %v85, %v120
    %v123 = vadd.f32 %v86, %v121
    %s124 = scalar_lea.vmem [#allocation6], 32
    %v125 = vld [vmem:[%s124] sm:$0xff]
    %v126 = vld [vmem:[%s124 + $0x8] sm:$0xff]
    %s127 = scalar_lea.vmem [#allocation4], 32
    %v128 = vld [vmem:[%s127] sm:$0xff]
    %v129 = vld [vmem:[%s127 + $0x8] sm:$0xff]
    %v130 = vadd.f32 %v125, %v128
    %v131 = vadd.f32 %v126, %v129
    %s132 = scalar_lea.vmem [#allocation2], 32
    %v133 = vld [vmem:[%s132] sm:$0xff]
    %v134 = vld [vmem:[%s132 + $0x8] sm:$0xff]
    %v135 = vsub.f32 %v130, %v133
    %v136 = vsub.f32 %v131, %v134
    %v137 = vmul.f32 %v135, %v135
    %v138 = vmul.f32 %v136, %v136
    %139 = vadd.xlane.f32.xlu0 %v137
    %v140 = vpop.xlane.xlu0 %139
    %141 = vadd.xlane.f32.xlu0 %v138
    %v142 = vpop.xlane.xlu0 %141
    %v143 = vrsqrt.pop %v140
    %v144 = vmul.f32 %v140, %v143
    %vm145 = vcmp.eq.f32.partialorder %v140, inf
    %v146 = vsel %vm145, %v140, %v144
    %vm147 = vcmp.eq.f32.partialorder %v140, 0.0
    %v148 = vand.u32 %v140, 2147483648
    %v149 = vsel %vm147, %v148, %v146
    %v150 = vrsqrt.pop %v142
    %v151 = vmul.f32 %v142, %v150
    %vm152 = vcmp.eq.f32.partialorder %v142, inf
    %v153 = vsel %vm152, %v142, %v151
    %vm154 = vcmp.eq.f32.partialorder %v142, 0.0
    %v155 = vand.u32 %v142, 2147483648
    %v156 = vsel %vm154, %v155, %v153
    %v157 = vmul.f32 %v149, -0.083333336
    %v158 = vmul.f32 %v156, -0.083333336
    %v159 = vadd.f32 %v122, %v157
    %v160 = vadd.f32 %v123, %v158
    %s161 = scalar_lea.vmem [#allocation6], 96
    %v162 = vld [vmem:[%s161] sm:$0xff]
    %v163 = vld [vmem:[%s161 + $0x8] sm:$0xff]
    %s164 = scalar_lea.vmem [#allocation4], 96
    %v165 = vld [vmem:[%s164] sm:$0xff]
    %v166 = vld [vmem:[%s164 + $0x8] sm:$0xff]
    %v167 = vadd.f32 %v162, %v165
    %v168 = vadd.f32 %v163, %v166
    %s169 = scalar_lea.vmem [#allocation2], 96
    %v170 = vld [vmem:[%s169] sm:$0xff]
    %v171 = vld [vmem:[%s169 + $0x8] sm:$0xff]
    %v172 = vsub.f32 %v167, %v170
    %v173 = vsub.f32 %v168, %v171
    %v174 = vmul.f32 %v172, %v172
    %v175 = vmul.f32 %v173, %v173
    %176 = vadd.xlane.f32.xlu0 %v174
    %v177 = vpop.xlane.xlu0 %176
    %178 = vadd.xlane.f32.xlu0 %v175
    %v179 = vpop.xlane.xlu0 %178
    %v180 = vrsqrt.pop %v177
    %v181 = vmul.f32 %v177, %v180
    %vm182 = vcmp.eq.f32.partialorder %v177, inf
    %v183 = vsel %vm182, %v177, %v181
    %vm184 = vcmp.eq.f32.partialorder %v177, 0.0
    %v185 = vand.u32 %v177, 2147483648
    %v186 = vsel %vm184, %v185, %v183
    %v187 = vrsqrt.pop %v179
    %v188 = vmul.f32 %v179, %v187
    %vm189 = vcmp.eq.f32.partialorder %v179, inf
    %v190 = vsel %vm189, %v179, %v188
    %vm191 = vcmp.eq.f32.partialorder %v179, 0.0
    %v192 = vand.u32 %v179, 2147483648
    %v193 = vsel %vm191, %v192, %v190
    %v194 = vmul.f32 %v186, -0.083333336
    %v195 = vmul.f32 %v193, -0.083333336
    %v196 = vadd.f32 %v159, %v194
    %v197 = vadd.f32 %v160, %v195
    %s198 = scalar_lea.vmem [#allocation2], 16
    %v199 = vld [vmem:[%s198] sm:$0xff]
    %v200 = vld [vmem:[%s198 + $0x8] sm:$0xff]
    %s201 = scalar_lea.vmem [#allocation6], 16
    %v202 = vld [vmem:[%s201] sm:$0xff]
    %v203 = vld [vmem:[%s201 + $0x8] sm:$0xff]
    %v204 = vadd.f32 %v199, %v202
    %v205 = vadd.f32 %v200, %v203
    %s206 = scalar_lea.vmem [#allocation4], 16
    %v207 = vld [vmem:[%s206] sm:$0xff]
    %v208 = vld [vmem:[%s206 + $0x8] sm:$0xff]
    %v209 = vsub.f32 %v204, %v207
    %v210 = vsub.f32 %v205, %v208
    %v211 = vmul.f32 %v209, %v209
    %v212 = vmul.f32 %v210, %v210
    %213 = vadd.xlane.f32.xlu0 %v211
    %v214 = vpop.xlane.xlu0 %213
    %215 = vadd.xlane.f32.xlu0 %v212
    %v216 = vpop.xlane.xlu0 %215
    %v217 = vrsqrt.pop %v214
    %v218 = vmul.f32 %v214, %v217
    %vm219 = vcmp.eq.f32.partialorder %v214, inf
    %v220 = vsel %vm219, %v214, %v218
    %vm221 = vcmp.eq.f32.partialorder %v214, 0.0
    %v222 = vand.u32 %v214, 2147483648
    %v223 = vsel %vm221, %v222, %v220
    %v224 = vrsqrt.pop %v216
    %v225 = vmul.f32 %v216, %v224
    %vm226 = vcmp.eq.f32.partialorder %v216, inf
    %v227 = vsel %vm226, %v216, %v225
    %vm228 = vcmp.eq.f32.partialorder %v216, 0.0
    %v229 = vand.u32 %v216, 2147483648
    %v230 = vsel %vm228, %v229, %v227
    %v231 = vmul.f32 %v223, -0.16666667
    %v232 = vmul.f32 %v230, -0.16666667
    %v233 = vadd.f32 %v196, %v231
    %v234 = vadd.f32 %v197, %v232
    %s235 = scalar_lea.vmem [#allocation2], 80
    %v236 = vld [vmem:[%s235] sm:$0xff]
    %v237 = vld [vmem:[%s235 + $0x8] sm:$0xff]
    %s238 = scalar_lea.vmem [#allocation6], 80
    %v239 = vld [vmem:[%s238] sm:$0xff]
    %v240 = vld [vmem:[%s238 + $0x8] sm:$0xff]
    %v241 = vadd.f32 %v236, %v239
    %v242 = vadd.f32 %v237, %v240
    %s243 = scalar_lea.vmem [#allocation4], 80
    %v244 = vld [vmem:[%s243] sm:$0xff]
    %v245 = vld [vmem:[%s243 + $0x8] sm:$0xff]
    %v246 = vsub.f32 %v241, %v244
    %v247 = vsub.f32 %v242, %v245
    %v248 = vmul.f32 %v246, %v246
    %v249 = vmul.f32 %v247, %v247
    %250 = vadd.xlane.f32.xlu0 %v248
    %v251 = vpop.xlane.xlu0 %250
    %252 = vadd.xlane.f32.xlu0 %v249
    %v253 = vpop.xlane.xlu0 %252
    %v254 = vrsqrt.pop %v251
    %v255 = vmul.f32 %v251, %v254
    %vm256 = vcmp.eq.f32.partialorder %v251, inf
    %v257 = vsel %vm256, %v251, %v255
    %vm258 = vcmp.eq.f32.partialorder %v251, 0.0
    %v259 = vand.u32 %v251, 2147483648
    %v260 = vsel %vm258, %v259, %v257
    %v261 = vrsqrt.pop %v253
    %v262 = vmul.f32 %v253, %v261
    %vm263 = vcmp.eq.f32.partialorder %v253, inf
    %v264 = vsel %vm263, %v253, %v262
    %vm265 = vcmp.eq.f32.partialorder %v253, 0.0
    %v266 = vand.u32 %v253, 2147483648
    %v267 = vsel %vm265, %v266, %v264
    %v268 = vmul.f32 %v260, -0.16666667
    %v269 = vmul.f32 %v267, -0.16666667
    %v270 = vadd.f32 %v233, %v268
    %v271 = vadd.f32 %v234, %v269
    %s272 = scalar_lea.vmem [#allocation2], 48
    %v273 = vld [vmem:[%s272] sm:$0xff]
    %v274 = vld [vmem:[%s272 + $0x8] sm:$0xff]
    %s275 = scalar_lea.vmem [#allocation4], 48
    %v276 = vld [vmem:[%s275] sm:$0xff]
    %v277 = vld [vmem:[%s275 + $0x8] sm:$0xff]
    %s278 = scalar_lea.vmem [#allocation6], 48
    %v279 = vld [vmem:[%s278] sm:$0xff]
    %v280 = vld [vmem:[%s278 + $0x8] sm:$0xff]
    %v281 = vmul.f32 %v276, %v279
    %v282 = vmul.f32 %v277, %v280
    %v283 = vsub.f32 %v273, %v281
    %v284 = vsub.f32 %v274, %v282
    %v285 = vmul.f32 %v283, %v283
    %v286 = vmul.f32 %v284, %v284
    %287 = vadd.xlane.f32.xlu0 %v285
    %v288 = vpop.xlane.xlu0 %287
    %289 = vadd.xlane.f32.xlu0 %v286
    %v290 = vpop.xlane.xlu0 %289
    %v291 = vrsqrt.pop %v288
    %v292 = vmul.f32 %v288, %v291
    %vm293 = vcmp.eq.f32.partialorder %v288, inf
    %v294 = vsel %vm293, %v288, %v292
    %vm295 = vcmp.eq.f32.partialorder %v288, 0.0
    %v296 = vand.u32 %v288, 2147483648
    %v297 = vsel %vm295, %v296, %v294
    %v298 = vrsqrt.pop %v290
    %v299 = vmul.f32 %v290, %v298
    %vm300 = vcmp.eq.f32.partialorder %v290, inf
    %v301 = vsel %vm300, %v290, %v299
    %vm302 = vcmp.eq.f32.partialorder %v290, 0.0
    %v303 = vand.u32 %v290, 2147483648
    %v304 = vsel %vm302, %v303, %v301
    %v305 = vmul.f32 %v297, -0.16666667
    %v306 = vmul.f32 %v304, -0.16666667
    %v307 = vadd.f32 %v270, %v305
    %v308 = vadd.f32 %v271, %v306
    %s309 = scalar_lea.vmem [#allocation2], 112
    %v310 = vld [vmem:[%s309] sm:$0xff]
    %v311 = vld [vmem:[%s309 + $0x8] sm:$0xff]
    %s312 = scalar_lea.vmem [#allocation4], 112
    %v313 = vld [vmem:[%s312] sm:$0xff]
    %v314 = vld [vmem:[%s312 + $0x8] sm:$0xff]
    %s315 = scalar_lea.vmem [#allocation6], 112
    %v316 = vld [vmem:[%s315] sm:$0xff]
    %v317 = vld [vmem:[%s315 + $0x8] sm:$0xff]
    %v318 = vmul.f32 %v313, %v316
    %v319 = vmul.f32 %v314, %v317
    %v320 = vsub.f32 %v310, %v318
    %v321 = vsub.f32 %v311, %v319
    %v322 = vmul.f32 %v320, %v320
    %v323 = vmul.f32 %v321, %v321
    %324 = vadd.xlane.f32.xlu0 %v322
    %v325 = vpop.xlane.xlu0 %324
    %326 = vadd.xlane.f32.xlu0 %v323
    %v327 = vpop.xlane.xlu0 %326
    %v328 = vrsqrt.pop %v325
    %v329 = vmul.f32 %v325, %v328
    %vm330 = vcmp.eq.f32.partialorder %v325, inf
    %v331 = vsel %vm330, %v325, %v329
    %vm332 = vcmp.eq.f32.partialorder %v325, 0.0
    %v333 = vand.u32 %v325, 2147483648
    %v334 = vsel %vm332, %v333, %v331
    %v335 = vrsqrt.pop %v327
    %v336 = vmul.f32 %v327, %v335
    %vm337 = vcmp.eq.f32.partialorder %v327, inf
    %v338 = vsel %vm337, %v327, %v336
    %vm339 = vcmp.eq.f32.partialorder %v327, 0.0
    %v340 = vand.u32 %v327, 2147483648
    %v341 = vsel %vm339, %v340, %v338
    %v342 = vmul.f32 %v334, -0.16666667
    %v343 = vmul.f32 %v341, -0.16666667
    %v344 = vadd.f32 %v307, %v342
    %v345 = vadd.f32 %v308, %v343
    %vm346 = vcmask 7168
    %347 = vst.msk [vmem:[%s3] sm:$0xff] %vm346, %v344
    %348 = vst.msk [vmem:[%s3 + $0x8] sm:$0xff] %vm346, %v345
    // Predicated region
    $region26: #{tpu_custom_call.1} parent=1 // pred_check
      _
    $region27: #{tpu_custom_call.1} parent=1 // pred_check_branch
      %350 = sbr.rel (0) target = $region29
    $region28: #{tpu_custom_call.1} parent=1 // pred_region
      _
    $region29: #{tpu_custom_call.1} parent=1 // pred_fallthru
      _
    // Predicated region
    $region30: #{tpu_custom_call.1} parent=1 // pred_check
      _
    $region31: #{tpu_custom_call.1} parent=1 // pred_check_branch
      %352 = sbr.rel (0) target = $region33
    $region32: #{tpu_custom_call.1} parent=1 // pred_region
      _
    $region33: #{tpu_custom_call.1} parent=1 // pred_fallthru
      _
    %353 = vsyncpa [#allocation3], 1
    %354 = vsyncpa [#allocation5], 1

</llo_original>
